<compile_context>
chip_gen: v6e
topology: v6e:2x2x1
jax: 0.10.0
libtpu: 0.0.40
codegen_flags: <defaults>
</compile_context>

<pallas_src>
import functools

import jax
import jax.numpy as jnp
from jax.experimental import pallas as pl
from jax.experimental.pallas import tpu as pltpu

input_size = 64
hidden_size1 = 8
hidden_size2 = 128
num_classes = 10

# Lane-dense padded dims used inside the kernel.
IN_P = 128    # input features 64 -> 128
H1_P = 128    # hidden1 8 -> 128
H2_P = 128    # hidden2 already 128
OUT_P = 128   # num_classes 10 -> 128
SUBLANE = 8


def _round_up(x, m):
    return (x + m - 1) // m * m


def mlp_kernel(x_ref,
               w1_ref, b1_ref,
               w2_ref, b2_ref,
               w3_ref, b3_ref,
               w4_ref, b4_ref,
               w5_ref, b5_ref,
               o_ref):
    """One (TB, 128) batch tile of the 5-layer MLP. Weights stay resident in VMEM."""
    compute_dtype = w1_ref.dtype  # bf16 MXU operand dtype

    def layer(h, w_ref, b_ref, relu):
        # bf16 x bf16 matmul, f32 accumulate; bias add / ReLU in f32.
        y = jnp.dot(h, w_ref[...], preferred_element_type=jnp.float32) + b_ref[...]
        if relu:
            y = jnp.maximum(y, 0.0).astype(compute_dtype)
        return y

    h = x_ref[...]                          # (TB, IN_P) bf16
    h = layer(h, w1_ref, b1_ref, True)
    h = layer(h, w2_ref, b2_ref, True)
    h = layer(h, w3_ref, b3_ref, True)
    h = layer(h, w4_ref, b4_ref, True)
    out = layer(h, w5_ref, b5_ref, False)   # (TB, OUT_P) f32
    o_ref[...] = out.astype(o_ref.dtype)    # lane-dense unmasked store


def _pad_params(params, compute_dtype=jnp.bfloat16):
    """Zero-pad narrow dims (64, 8, 10) to 128 and cast weights to the MXU operand dtype.

    Padding is exact: padded w1 columns + zero b1 entries give ReLU(0)=0 in the padded
    hidden lanes, padded w2 rows are zero so those lanes contribute nothing, and padded
    w5 columns only fill output lanes that are sliced off in the wrapper.
    """
    (w1, b1), (w2, b2), (w3, b3), (w4, b4), (w5, b5) = params

    def pad2(a, rows, cols):
        return jnp.pad(a, ((0, rows - a.shape[0]), (0, cols - a.shape[1])))

    w1p = pad2(w1, IN_P, H1_P)
    b1p = pad2(b1, 1, H1_P)
    w2p = pad2(w2, H1_P, H2_P)
    w5p = pad2(w5, H2_P, OUT_P)
    b5p = pad2(b5, 1, OUT_P)

    ws = [w1p, w2p, w3, w4, w5p]
    bs = [b1p, b2, b3, b4, b5p]
    ws = [w.astype(compute_dtype) for w in ws]
    bs = [b.astype(jnp.float32) for b in bs]   # bias add / ReLU stay f32
    return list(zip(ws, bs))


@functools.partial(jax.jit, static_argnames=("tb",))
def neural_net4_forward(x, params, tb=512):
    """x: (B, input_size) float32. Returns (B, num_classes) float32."""
    B = x.shape[0]
    padded = _pad_params(params)

    # Batch tile: multiple of 8 sublanes, capped at `tb` rows (>=256 fills the MXU M dim
    # for large batches; small demo batches just get a single tile).
    TB = min(tb, _round_up(B, SUBLANE))
    B_pad = _round_up(B, TB)

    # Pad batch + feature dims; activations in bf16 for the MXU.
    xp = jnp.pad(x, ((0, B_pad - B), (0, IN_P - input_size))).astype(jnp.bfloat16)

    x_spec = pl.BlockSpec((TB, IN_P), lambda i: (i, 0))
    out_spec = pl.BlockSpec((TB, OUT_P), lambda i: (i, 0))
    # Weights/biases: full array, constant block index -> fetched once, resident in VMEM.
    const = lambda shape: pl.BlockSpec(shape, lambda i: (0, 0))

    wb_specs = []
    flat_wb = []
    for (w, b) in padded:
        wb_specs += [const(w.shape), const(b.shape)]
        flat_wb += [w, b]

    out_padded = pl.pallas_call(
        mlp_kernel,
        out_shape=jax.ShapeDtypeStruct((B_pad, OUT_P), jnp.float32),
        grid=(B_pad // TB,),
        in_specs=[x_spec] + wb_specs,
        out_specs=out_spec,
        compiler_params=pltpu.CompilerParams(
            dimension_semantics=("parallel",)),  # megacore batch sharding on v7x
    )(xp, *flat_wb)

    return out_padded[:B, :num_classes]


def init_params(key):
    """Weights stored as (in, out); biases as (1, out). Matches torch.nn.Linear init range."""
    dims = [(input_size, hidden_size1),
            (hidden_size1, hidden_size2),
            (hidden_size2, hidden_size2),
            (hidden_size2, hidden_size2),
            (hidden_size2, num_classes)]
    params = []
    for (fan_in, fan_out) in dims:
        key, kw, kb = jax.random.split(key, 3)
        bound = 1.0 / jnp.sqrt(fan_in)
        w = jax.random.uniform(kw, (fan_in, fan_out), jnp.float32, -bound, bound)
        b = jax.random.uniform(kb, (1, fan_out), jnp.float32, -bound, bound)
        params.append((w, b))
    return params


def reference_forward_f32(x, params):
    h = x
    for i, (w, b) in enumerate(params):
        h = h @ w + b
        if i < len(params) - 1:
            h = jnp.maximum(h, 0.0)
    return h


def reference_forward_kernel_precision(x, params):
    """Same numeric path as the kernel: bf16 matmul operands, f32 accumulate/bias/ReLU."""
    padded = _pad_params(params)
    h = jnp.pad(x, ((0, 0), (0, IN_P - input_size))).astype(jnp.bfloat16)
    out = None
    for i, (w, b) in enumerate(padded):
        y = jnp.dot(h, w, preferred_element_type=jnp.float32) + b
        if i < len(padded) - 1:
            h = jnp.maximum(y, 0.0).astype(jnp.bfloat16)
        else:
            out = y
    return out[:, :num_classes]


if __name__ == "__main__":
    key = jax.random.PRNGKey(0)
    key, kx = jax.random.split(key)

    batch = 8
    # Input as (B, 8, 8) images; nn.Flatten() is a reshape in the wrapper.
    x_img = jax.random.normal(kx, (batch, 8, 8), jnp.float32)
    x = x_img.reshape(batch, input_size)

    params = init_params(key)

    out = neural_net4_forward(x, params)
    out = jax.block_until_ready(out)
    assert out.shape == (batch, num_classes)

    # Exact-semantics reference (same bf16-operand / f32-accumulate path).
    ref_match = reference_forward_kernel_precision(x, params)
    assert jnp.allclose(out, ref_match, atol=1e-3, rtol=1e-3), float(
        jnp.max(jnp.abs(out - ref_match)))

    # Sanity check against the pure-f32 PyTorch-equivalent forward (bf16 rounding tolerance).
    ref_f32 = reference_forward_f32(x, params)
    assert float(jnp.max(jnp.abs(out - ref_f32))) < 5e-2

    print("KERNEL_OK")
</pallas_src>

<mosaic_0001>
module attributes {stable_mosaic.version = 11 : i64} {
  func.func @mlp_kernel(%arg0: i32, %arg1: memref<8x128xbf16, #tpu.memory_space<vmem>>, %arg2: memref<128x128xbf16, #tpu.memory_space<vmem>>, %arg3: memref<1x128xf32, #tpu.memory_space<vmem>>, %arg4: memref<128x128xbf16, #tpu.memory_space<vmem>>, %arg5: memref<1x128xf32, #tpu.memory_space<vmem>>, %arg6: memref<128x128xbf16, #tpu.memory_space<vmem>>, %arg7: memref<1x128xf32, #tpu.memory_space<vmem>>, %arg8: memref<128x128xbf16, #tpu.memory_space<vmem>>, %arg9: memref<1x128xf32, #tpu.memory_space<vmem>>, %arg10: memref<128x128xbf16, #tpu.memory_space<vmem>>, %arg11: memref<1x128xf32, #tpu.memory_space<vmem>>, %arg12: memref<8x128xf32, #tpu.memory_space<vmem>>) attributes {dimension_semantics = [#tpu.dimension_semantics<parallel>], iteration_bounds = array<i64: 1>, scalar_prefetch = 0 : i64, scratch_operands = 0 : i64, tpu.core_type = #tpu.core_type<tc>, window_params = [{transform_indices = @transform_0, window_bounds = array<i64: 8, 128>}, {pipeline_mode = #tpu.pipeline_mode<synchronous>, transform_indices = @transform_1, window_bounds = array<i64: 128, 128>}, {pipeline_mode = #tpu.pipeline_mode<synchronous>, transform_indices = @transform_2, window_bounds = array<i64: 1, 128>}, {pipeline_mode = #tpu.pipeline_mode<synchronous>, transform_indices = @transform_3, window_bounds = array<i64: 128, 128>}, {pipeline_mode = #tpu.pipeline_mode<synchronous>, transform_indices = @transform_4, window_bounds = array<i64: 1, 128>}, {pipeline_mode = #tpu.pipeline_mode<synchronous>, transform_indices = @transform_5, window_bounds = array<i64: 128, 128>}, {pipeline_mode = #tpu.pipeline_mode<synchronous>, transform_indices = @transform_6, window_bounds = array<i64: 1, 128>}, {pipeline_mode = #tpu.pipeline_mode<synchronous>, transform_indices = @transform_7, window_bounds = array<i64: 128, 128>}, {pipeline_mode = #tpu.pipeline_mode<synchronous>, transform_indices = @transform_8, window_bounds = array<i64: 1, 128>}, {pipeline_mode = #tpu.pipeline_mode<synchronous>, transform_indices = @transform_9, window_bounds = array<i64: 128, 128>}, {pipeline_mode = #tpu.pipeline_mode<synchronous>, transform_indices = @transform_10, window_bounds = array<i64: 1, 128>}, {transform_indices = @transform_11, window_bounds = array<i64: 8, 128>}]} {
    %c0 = arith.constant 0 : index
    %c0_0 = arith.constant 0 : index
    %0 = vector.load %arg1[%c0, %c0_0] : memref<8x128xbf16, #tpu.memory_space<vmem>>, vector<8x128xbf16>
    %c0_1 = arith.constant 0 : index
    %c0_2 = arith.constant 0 : index
    %1 = vector.load %arg2[%c0_1, %c0_2] : memref<128x128xbf16, #tpu.memory_space<vmem>>, vector<128x128xbf16>
    %cst = arith.constant dense<0.000000e+00> : vector<8x128xf32>
    %2 = tpu.matmul %0, %1, %cst {dimension_numbers = #tpu.dot_dimension_numbers<[1], [0], [0], [1], [0, 0, 1, 1], [], []>} : vector<8x128xbf16>, vector<128x128xbf16>, vector<8x128xf32> -> vector<8x128xf32>
    %c0_3 = arith.constant 0 : index
    %c0_4 = arith.constant 0 : index
    %3 = vector.load %arg3[%c0_3, %c0_4] : memref<1x128xf32, #tpu.memory_space<vmem>>, vector<1x128xf32>
    %4 = vector.broadcast %3 : vector<1x128xf32> to vector<8x128xf32>
    %5 = arith.addf %2, %4 : vector<8x128xf32>
    %cst_5 = arith.constant 0.000000e+00 : f32
    %6 = vector.broadcast %cst_5 : f32 to vector<8x128xf32>
    %7 = arith.maximumf %5, %6 : vector<8x128xf32>
    %8 = arith.truncf %7 : vector<8x128xf32> to vector<8x128xbf16>
    %c0_6 = arith.constant 0 : index
    %c0_7 = arith.constant 0 : index
    %9 = vector.load %arg4[%c0_6, %c0_7] : memref<128x128xbf16, #tpu.memory_space<vmem>>, vector<128x128xbf16>
    %cst_8 = arith.constant dense<0.000000e+00> : vector<8x128xf32>
    %10 = tpu.matmul %8, %9, %cst_8 {dimension_numbers = #tpu.dot_dimension_numbers<[1], [0], [0], [1], [0, 0, 1, 1], [], []>} : vector<8x128xbf16>, vector<128x128xbf16>, vector<8x128xf32> -> vector<8x128xf32>
    %c0_9 = arith.constant 0 : index
    %c0_10 = arith.constant 0 : index
    %11 = vector.load %arg5[%c0_9, %c0_10] : memref<1x128xf32, #tpu.memory_space<vmem>>, vector<1x128xf32>
    %12 = vector.broadcast %11 : vector<1x128xf32> to vector<8x128xf32>
    %13 = arith.addf %10, %12 : vector<8x128xf32>
    %cst_11 = arith.constant 0.000000e+00 : f32
    %14 = vector.broadcast %cst_11 : f32 to vector<8x128xf32>
    %15 = arith.maximumf %13, %14 : vector<8x128xf32>
    %16 = arith.truncf %15 : vector<8x128xf32> to vector<8x128xbf16>
    %c0_12 = arith.constant 0 : index
    %c0_13 = arith.constant 0 : index
    %17 = vector.load %arg6[%c0_12, %c0_13] : memref<128x128xbf16, #tpu.memory_space<vmem>>, vector<128x128xbf16>
    %cst_14 = arith.constant dense<0.000000e+00> : vector<8x128xf32>
    %18 = tpu.matmul %16, %17, %cst_14 {dimension_numbers = #tpu.dot_dimension_numbers<[1], [0], [0], [1], [0, 0, 1, 1], [], []>} : vector<8x128xbf16>, vector<128x128xbf16>, vector<8x128xf32> -> vector<8x128xf32>
    %c0_15 = arith.constant 0 : index
    %c0_16 = arith.constant 0 : index
    %19 = vector.load %arg7[%c0_15, %c0_16] : memref<1x128xf32, #tpu.memory_space<vmem>>, vector<1x128xf32>
    %20 = vector.broadcast %19 : vector<1x128xf32> to vector<8x128xf32>
    %21 = arith.addf %18, %20 : vector<8x128xf32>
    %cst_17 = arith.constant 0.000000e+00 : f32
    %22 = vector.broadcast %cst_17 : f32 to vector<8x128xf32>
    %23 = arith.maximumf %21, %22 : vector<8x128xf32>
    %24 = arith.truncf %23 : vector<8x128xf32> to vector<8x128xbf16>
    %c0_18 = arith.constant 0 : index
    %c0_19 = arith.constant 0 : index
    %25 = vector.load %arg8[%c0_18, %c0_19] : memref<128x128xbf16, #tpu.memory_space<vmem>>, vector<128x128xbf16>
    %cst_20 = arith.constant dense<0.000000e+00> : vector<8x128xf32>
    %26 = tpu.matmul %24, %25, %cst_20 {dimension_numbers = #tpu.dot_dimension_numbers<[1], [0], [0], [1], [0, 0, 1, 1], [], []>} : vector<8x128xbf16>, vector<128x128xbf16>, vector<8x128xf32> -> vector<8x128xf32>
    %c0_21 = arith.constant 0 : index
    %c0_22 = arith.constant 0 : index
    %27 = vector.load %arg9[%c0_21, %c0_22] : memref<1x128xf32, #tpu.memory_space<vmem>>, vector<1x128xf32>
    %28 = vector.broadcast %27 : vector<1x128xf32> to vector<8x128xf32>
    %29 = arith.addf %26, %28 : vector<8x128xf32>
    %cst_23 = arith.constant 0.000000e+00 : f32
    %30 = vector.broadcast %cst_23 : f32 to vector<8x128xf32>
    %31 = arith.maximumf %29, %30 : vector<8x128xf32>
    %32 = arith.truncf %31 : vector<8x128xf32> to vector<8x128xbf16>
    %c0_24 = arith.constant 0 : index
    %c0_25 = arith.constant 0 : index
    %33 = vector.load %arg10[%c0_24, %c0_25] : memref<128x128xbf16, #tpu.memory_space<vmem>>, vector<128x128xbf16>
    %cst_26 = arith.constant dense<0.000000e+00> : vector<8x128xf32>
    %34 = tpu.matmul %32, %33, %cst_26 {dimension_numbers = #tpu.dot_dimension_numbers<[1], [0], [0], [1], [0, 0, 1, 1], [], []>} : vector<8x128xbf16>, vector<128x128xbf16>, vector<8x128xf32> -> vector<8x128xf32>
    %c0_27 = arith.constant 0 : index
    %c0_28 = arith.constant 0 : index
    %35 = vector.load %arg11[%c0_27, %c0_28] : memref<1x128xf32, #tpu.memory_space<vmem>>, vector<1x128xf32>
    %36 = vector.broadcast %35 : vector<1x128xf32> to vector<8x128xf32>
    %37 = arith.addf %34, %36 : vector<8x128xf32>
    %c0_29 = arith.constant 0 : index
    %c0_30 = arith.constant 0 : index
    %38 = vector.load %arg12[%c0_29, %c0_30] : memref<8x128xf32, #tpu.memory_space<vmem>>, vector<8x128xf32>
    tpu.vector_store %arg12[%c0_29, %c0_30], %37 {strides = array<i32>} : memref<8x128xf32, #tpu.memory_space<vmem>>, vector<8x128xf32>,
    return
  }
  func.func @transform_0(%arg0: i32) -> (i32, i32) {
    %c0_i32 = arith.constant 0 : i32
    %c0_i32_0 = arith.constant 0 : i32
    return %arg0, %c0_i32 : i32, i32
  }
  func.func @transform_1(%arg0: i32) -> (i32, i32) {
    %c0_i32 = arith.constant 0 : i32
    %c0_i32_0 = arith.constant 0 : i32
    %c0_i32_1 = arith.constant 0 : i32
    return %c0_i32, %c0_i32_0 : i32, i32
  }
  func.func @transform_2(%arg0: i32) -> (i32, i32) {
    %c0_i32 = arith.constant 0 : i32
    %c0_i32_0 = arith.constant 0 : i32
    %c0_i32_1 = arith.constant 0 : i32
    return %c0_i32, %c0_i32_0 : i32, i32
  }
  func.func @transform_3(%arg0: i32) -> (i32, i32) {
    %c0_i32 = arith.constant 0 : i32
    %c0_i32_0 = arith.constant 0 : i32
    %c0_i32_1 = arith.constant 0 : i32
    return %c0_i32, %c0_i32_0 : i32, i32
  }
  func.func @transform_4(%arg0: i32) -> (i32, i32) {
    %c0_i32 = arith.constant 0 : i32
    %c0_i32_0 = arith.constant 0 : i32
    %c0_i32_1 = arith.constant 0 : i32
    return %c0_i32, %c0_i32_0 : i32, i32
  }
  func.func @transform_5(%arg0: i32) -> (i32, i32) {
    %c0_i32 = arith.constant 0 : i32
    %c0_i32_0 = arith.constant 0 : i32
    %c0_i32_1 = arith.constant 0 : i32
    return %c0_i32, %c0_i32_0 : i32, i32
  }
  func.func @transform_6(%arg0: i32) -> (i32, i32) {
    %c0_i32 = arith.constant 0 : i32
    %c0_i32_0 = arith.constant 0 : i32
    %c0_i32_1 = arith.constant 0 : i32
    return %c0_i32, %c0_i32_0 : i32, i32
  }
  func.func @transform_7(%arg0: i32) -> (i32, i32) {
    %c0_i32 = arith.constant 0 : i32
    %c0_i32_0 = arith.constant 0 : i32
    %c0_i32_1 = arith.constant 0 : i32
    return %c0_i32, %c0_i32_0 : i32, i32
  }
  func.func @transform_8(%arg0: i32) -> (i32, i32) {
    %c0_i32 = arith.constant 0 : i32
    %c0_i32_0 = arith.constant 0 : i32
    %c0_i32_1 = arith.constant 0 : i32
    return %c0_i32, %c0_i32_0 : i32, i32
  }
  func.func @transform_9(%arg0: i32) -> (i32, i32) {
    %c0_i32 = arith.constant 0 : i32
    %c0_i32_0 = arith.constant 0 : i32
    %c0_i32_1 = arith.constant 0 : i32
    return %c0_i32, %c0_i32_0 : i32, i32
  }
  func.func @transform_10(%arg0: i32) -> (i32, i32) {
    %c0_i32 = arith.constant 0 : i32
    %c0_i32_0 = arith.constant 0 : i32
    %c0_i32_1 = arith.constant 0 : i32
    return %c0_i32, %c0_i32_0 : i32, i32
  }
  func.func @transform_11(%arg0: i32) -> (i32, i32) {
    %c0_i32 = arith.constant 0 : i32
    %c0_i32_0 = arith.constant 0 : i32
    return %arg0, %c0_i32 : i32, i32
  }
}

</mosaic_0001>

<llo_original>
// kernel: neural_net4_forward.1
$region0: #{neural_net4_forward.1}
  #allocation0 [shape = 'u32[]', space=smem, size = 0x4, offset = 0x4, fixed_abs, tag = 'smem constant byte address 0x4 - core index']
  #allocation1 [shape = 'u32[144,128]{1,0:T(1,128)}', space=vmem, size = 0x12000, scoped, tag = 'internal scratch']
  %s0 = inlined_call_operand.vmem [shape: bf16[8,128], index: 0, kind: input, shape index: {}]
  %s1 = inlined_call_operand.vmem [shape: bf16[128,128], index: 1, kind: input, shape index: {}]
  %s2 = inlined_call_operand.vmem [shape: f32[1,128], index: 2, kind: input, shape index: {}]
  %s3 = inlined_call_operand.vmem [shape: bf16[128,128], index: 3, kind: input, shape index: {}]
  %s4 = inlined_call_operand.vmem [shape: f32[1,128], index: 4, kind: input, shape index: {}]
  %s5 = inlined_call_operand.vmem [shape: bf16[128,128], index: 5, kind: input, shape index: {}]
  %s6 = inlined_call_operand.vmem [shape: f32[1,128], index: 6, kind: input, shape index: {}]
  %s7 = inlined_call_operand.vmem [shape: bf16[128,128], index: 7, kind: input, shape index: {}]
  %s8 = inlined_call_operand.vmem [shape: f32[1,128], index: 8, kind: input, shape index: {}]
  %s9 = inlined_call_operand.vmem [shape: bf16[128,128], index: 9, kind: input, shape index: {}]
  %s10 = inlined_call_operand.vmem [shape: f32[1,128], index: 10, kind: input, shape index: {}]
  %s11 = inlined_call_operand.hbm [shape: f32[8,128], index: 11, kind: output, shape index: {}]
  %s12 = sld [smem:[#allocation0]]
  $region54: #{neural_net4_forward.1} parent=0
    _
  %s14 = ssub.s32 1, %s12
  %s15 = scalar_select 0, %s14, %s12
  $region1: #{neural_net4_forward.1} parent=0
    #allocation2 [shape = 'u8[4096]{0}', space=vmem, size = 0x1000, scoped, tag = 'output window, operand 0, single buffered']
    #allocation3 [shape = 's32[1]{0}', space=sflag, size = 0x4, scoped, tag = 'scoped memory for neural_net4_forward.1']
    %16 = vsyncpa [#allocation3], 0
    // Predicated region
    $region2: #{neural_net4_forward.1} parent=1 // pred_check
      _
    $region3: #{neural_net4_forward.1} parent=1 // pred_check_branch
      %18 = sbr.rel (0) target = $region5
    $region4: #{neural_net4_forward.1} parent=1 // pred_region
      _
    $region5: #{neural_net4_forward.1} parent=1 // pred_fallthru
      _
    // Predicated region
    $region6: #{neural_net4_forward.1} parent=1 // pred_check
      _
    $region7: #{neural_net4_forward.1} parent=1 // pred_check_branch
      %20 = sbr.rel (0) target = $region9
    $region8: #{neural_net4_forward.1} parent=1 // pred_region
      _
    $region9: #{neural_net4_forward.1} parent=1 // pred_fallthru
      _
    // Predicated region
    $region10: #{neural_net4_forward.1} parent=1 // pred_check
      _
    $region11: #{neural_net4_forward.1} parent=1 // pred_check_branch
      %22 = sbr.rel (0) target = $region13
    $region12: #{neural_net4_forward.1} parent=1 // pred_region
      _
    $region13: #{neural_net4_forward.1} parent=1 // pred_fallthru
      _
    // Predicated region
    $region14: #{neural_net4_forward.1} parent=1 // pred_check
      _
    $region15: #{neural_net4_forward.1} parent=1 // pred_check_branch
      %24 = sbr.rel (0) target = $region17
    $region16: #{neural_net4_forward.1} parent=1 // pred_region
      _
    $region17: #{neural_net4_forward.1} parent=1 // pred_fallthru
      _
    // Predicated region
    $region18: #{neural_net4_forward.1} parent=1 // pred_check
      _
    $region19: #{neural_net4_forward.1} parent=1 // pred_check_branch
      %26 = sbr.rel (0) target = $region21
    $region20: #{neural_net4_forward.1} parent=1 // pred_region
      _
    $region21: #{neural_net4_forward.1} parent=1 // pred_fallthru
      _
    // Predicated region
    $region22: #{neural_net4_forward.1} parent=1 // pred_check
      _
    $region23: #{neural_net4_forward.1} parent=1 // pred_check_branch
      %28 = sbr.rel (0) target = $region25
    $region24: #{neural_net4_forward.1} parent=1 // pred_region
      _
    $region25: #{neural_net4_forward.1} parent=1 // pred_fallthru
      _
    // Predicated region
    $region26: #{neural_net4_forward.1} parent=1 // pred_check
      _
    $region27: #{neural_net4_forward.1} parent=1 // pred_check_branch
      %30 = sbr.rel (0) target = $region29
    $region28: #{neural_net4_forward.1} parent=1 // pred_region
      _
    $region29: #{neural_net4_forward.1} parent=1 // pred_fallthru
      _
    // Predicated region
    $region30: #{neural_net4_forward.1} parent=1 // pred_check
      _
    $region31: #{neural_net4_forward.1} parent=1 // pred_check_branch
      %32 = sbr.rel (0) target = $region33
    $region32: #{neural_net4_forward.1} parent=1 // pred_region
      _
    $region33: #{neural_net4_forward.1} parent=1 // pred_fallthru
      _
    // Predicated region
    $region34: #{neural_net4_forward.1} parent=1 // pred_check
      _
    $region35: #{neural_net4_forward.1} parent=1 // pred_check_branch
      %34 = sbr.rel (0) target = $region37
    $region36: #{neural_net4_forward.1} parent=1 // pred_region
      _
    $region37: #{neural_net4_forward.1} parent=1 // pred_fallthru
      _
    // Predicated region
    $region38: #{neural_net4_forward.1} parent=1 // pred_check
      _
    $region39: #{neural_net4_forward.1} parent=1 // pred_check_branch
      %36 = sbr.rel (0) target = $region41
    $region40: #{neural_net4_forward.1} parent=1 // pred_region
      _
    $region41: #{neural_net4_forward.1} parent=1 // pred_fallthru
      _
    // Predicated region
    $region42: #{neural_net4_forward.1} parent=1 // pred_check
      _
    $region43: #{neural_net4_forward.1} parent=1 // pred_check_branch
      %38 = sbr.rel (0) target = $region45
    $region44: #{neural_net4_forward.1} parent=1 // pred_region
      _
    $region45: #{neural_net4_forward.1} parent=1 // pred_fallthru
      _
    %v40 = vld [vmem:[%s0] sm:$0xf]
    %v41 = vld [vmem:[%s1] sm:$0xf]
    %v42 = vld [vmem:[%s1 + $0x4] sm:$0xf]
    %v43 = vld [vmem:[%s1 + $0x8] sm:$0xf]
    %v44 = vld [vmem:[%s1 + $0xc] sm:$0xf]
    %v45 = vld [vmem:[%s1 + $0x10] sm:$0xf]
    %v46 = vld [vmem:[%s1 + $0x14] sm:$0xf]
    %v47 = vld [vmem:[%s1 + $0x18] sm:$0xf]
    %v48 = vld [vmem:[%s1 + $0x1c] sm:$0xf]
    %v49 = vld [vmem:[%s1 + $0x20] sm:$0xf]
    %v50 = vld [vmem:[%s1 + $0x24] sm:$0xf]
    %v51 = vld [vmem:[%s1 + $0x28] sm:$0xf]
    %v52 = vld [vmem:[%s1 + $0x2c] sm:$0xf]
    %v53 = vld [vmem:[%s1 + $0x30] sm:$0xf]
    %v54 = vld [vmem:[%s1 + $0x34] sm:$0xf]
    %v55 = vld [vmem:[%s1 + $0x38] sm:$0xf]
    %v56 = vld [vmem:[%s1 + $0x3c] sm:$0xf]
    %v57 = vld [vmem:[%s2] sm:$0x1]
    %v59 = vlaneseq
    %v60 = vshrl.u32 %v59, 7
    %v61 = vsub.s32 0, %v60
    %v62 = vrot.slane %v57, %v61
    %v80 = vunpack.c.l.b16 %v41
    %v81 = vunpack.c.l.b16 %v42
    %v82 = vunpack.c.l.b16 %v43
    %v83 = vunpack.c.l.b16 %v44
    %v84 = vunpack.c.l.b16 %v45
    %v85 = vunpack.c.l.b16 %v46
    %v86 = vunpack.c.l.b16 %v47
    %v87 = vunpack.c.l.b16 %v48
    %v88 = vunpack.c.l.b16 %v49
    %v89 = vunpack.c.l.b16 %v50
    %v90 = vunpack.c.l.b16 %v51
    %v91 = vunpack.c.l.b16 %v52
    %v92 = vunpack.c.l.b16 %v53
    %v93 = vunpack.c.l.b16 %v54
    %v94 = vunpack.c.l.b16 %v55
    %v95 = vunpack.c.l.b16 %v56
    %v96 = vpack.c.b16 %v81, %v80
    %v97 = vpack.c.b16 %v83, %v82
    %v98 = vpack.c.b16 %v85, %v84
    %v99 = vpack.c.b16 %v87, %v86
    %v100 = vpack.c.b16 %v89, %v88
    %v101 = vpack.c.b16 %v91, %v90
    %v102 = vpack.c.b16 %v93, %v92
    %v103 = vpack.c.b16 %v95, %v94
    %112 = vmatprep.subr.bf16.mxu0 0
    %113 = vmatpush1.bf16.msra.mxu0 %v103
    %114 = vmatprep.subr.bf16.mxu0 0
    %115 = vmatpush1.bf16.msra.mxu0 %v102
    %116 = vmatprep.subr.bf16.mxu0 0
    %117 = vmatpush1.bf16.msra.mxu0 %v101
    %118 = vmatprep.subr.bf16.mxu0 0
    %119 = vmatpush1.bf16.msra.mxu0 %v100
    %120 = vmatprep.subr.bf16.mxu0 0
    %121 = vmatpush1.bf16.msra.mxu0 %v99
    %122 = vmatprep.subr.bf16.mxu0 0
    %123 = vmatpush1.bf16.msra.mxu0 %v98
    %124 = vmatprep.subr.bf16.mxu0 0
    %125 = vmatpush1.bf16.msra.mxu0 %v97
    %126 = vmatprep.subr.bf16.mxu0 0
    %127 = vmatpush1.bf16.msra.mxu0 %v96
    %128 = vmatprep.subr.bf16.mxu0 0
    %129 = vmatpush2.bf16.msra.mxu0 0
    %130 = vmatprep.subr.bf16.mxu0 0
    %131 = vmatpush2.bf16.msra.mxu0 0
    %132 = vmatprep.subr.bf16.mxu0 0
    %133 = vmatpush2.bf16.msra.mxu0 0
    %134 = vmatprep.subr.bf16.mxu0 0
    %135 = vmatpush2.bf16.msra.mxu0 0
    %136 = vmatprep.subr.bf16.mxu0 0
    %137 = vmatpush2.bf16.msra.mxu0 0
    %138 = vmatprep.subr.bf16.mxu0 0
    %139 = vmatpush2.bf16.msra.mxu0 0
    %140 = vmatprep.subr.bf16.mxu0 0
    %141 = vmatpush2.bf16.msra.mxu0 0
    %142 = vmatprep.subr.bf16.mxu0 0
    %143 = vmatpush2.bf16.msra.mxu0 0
    %144 = vmatprep.mubr.bf16.mxu0 0
    %145 = vmatmul.mubr.bf16.gmra.mxu0 %v40
    %v146 = vpop.f32.mrf.mxu0
    %v147 = vadd.f32 %v62, %v146
    %v148 = vpop.f32.mrf.mxu0
    %v149 = vpop.f32.mrf.mxu0
    %v150 = vpop.f32.mrf.mxu0
    %151 = vdwg.mxu0
    %v152 = vmax.f32 %v147, 0.0
    %v153 = vpack.c.bf16 %v152, %v152
    %v154 = vld [vmem:[%s3] sm:$0xf]
    %v155 = vld [vmem:[%s3 + $0x4] sm:$0xf]
    %v156 = vld [vmem:[%s3 + $0x8] sm:$0xf]
    %v157 = vld [vmem:[%s3 + $0xc] sm:$0xf]
    %v158 = vld [vmem:[%s3 + $0x10] sm:$0xf]
    %v159 = vld [vmem:[%s3 + $0x14] sm:$0xf]
    %v160 = vld [vmem:[%s3 + $0x18] sm:$0xf]
    %v161 = vld [vmem:[%s3 + $0x1c] sm:$0xf]
    %v162 = vld [vmem:[%s3 + $0x20] sm:$0xf]
    %v163 = vld [vmem:[%s3 + $0x24] sm:$0xf]
    %v164 = vld [vmem:[%s3 + $0x28] sm:$0xf]
    %v165 = vld [vmem:[%s3 + $0x2c] sm:$0xf]
    %v166 = vld [vmem:[%s3 + $0x30] sm:$0xf]
    %v167 = vld [vmem:[%s3 + $0x34] sm:$0xf]
    %v168 = vld [vmem:[%s3 + $0x38] sm:$0xf]
    %v169 = vld [vmem:[%s3 + $0x3c] sm:$0xf]
    %v170 = vld [vmem:[%s4] sm:$0x1]
    %v172 = vlaneseq
    %v173 = vshrl.u32 %v172, 7
    %v174 = vsub.s32 0, %v173
    %v175 = vrot.slane %v170, %v174
    %v193 = vunpack.c.l.b16 %v154
    %v194 = vunpack.c.l.b16 %v155
    %v195 = vunpack.c.l.b16 %v156
    %v196 = vunpack.c.l.b16 %v157
    %v197 = vunpack.c.l.b16 %v158
    %v198 = vunpack.c.l.b16 %v159
    %v199 = vunpack.c.l.b16 %v160
    %v200 = vunpack.c.l.b16 %v161
    %v201 = vunpack.c.l.b16 %v162
    %v202 = vunpack.c.l.b16 %v163
    %v203 = vunpack.c.l.b16 %v164
    %v204 = vunpack.c.l.b16 %v165
    %v205 = vunpack.c.l.b16 %v166
    %v206 = vunpack.c.l.b16 %v167
    %v207 = vunpack.c.l.b16 %v168
    %v208 = vunpack.c.l.b16 %v169
    %v209 = vpack.c.b16 %v194, %v193
    %v210 = vpack.c.b16 %v196, %v195
    %v211 = vpack.c.b16 %v198, %v197
    %v212 = vpack.c.b16 %v200, %v199
    %v213 = vpack.c.b16 %v202, %v201
    %v214 = vpack.c.b16 %v204, %v203
    %v215 = vpack.c.b16 %v206, %v205
    %v216 = vpack.c.b16 %v208, %v207
    %225 = vmatprep.subr.bf16.mxu0 0
    %226 = vmatpush1.bf16.msra.mxu0 %v216
    %227 = vmatprep.subr.bf16.mxu0 0
    %228 = vmatpush1.bf16.msra.mxu0 %v215
    %229 = vmatprep.subr.bf16.mxu0 0
    %230 = vmatpush1.bf16.msra.mxu0 %v214
    %231 = vmatprep.subr.bf16.mxu0 0
    %232 = vmatpush1.bf16.msra.mxu0 %v213
    %233 = vmatprep.subr.bf16.mxu0 0
    %234 = vmatpush1.bf16.msra.mxu0 %v212
    %235 = vmatprep.subr.bf16.mxu0 0
    %236 = vmatpush1.bf16.msra.mxu0 %v211
    %237 = vmatprep.subr.bf16.mxu0 0
    %238 = vmatpush1.bf16.msra.mxu0 %v210
    %239 = vmatprep.subr.bf16.mxu0 0
    %240 = vmatpush1.bf16.msra.mxu0 %v209
    %241 = vmatprep.subr.bf16.mxu0 0
    %242 = vmatpush2.bf16.msra.mxu0 0
    %243 = vmatprep.subr.bf16.mxu0 0
    %244 = vmatpush2.bf16.msra.mxu0 0
    %245 = vmatprep.subr.bf16.mxu0 0
    %246 = vmatpush2.bf16.msra.mxu0 0
    %247 = vmatprep.subr.bf16.mxu0 0
    %248 = vmatpush2.bf16.msra.mxu0 0
    %249 = vmatprep.subr.bf16.mxu0 0
    %250 = vmatpush2.bf16.msra.mxu0 0
    %251 = vmatprep.subr.bf16.mxu0 0
    %252 = vmatpush2.bf16.msra.mxu0 0
    %253 = vmatprep.subr.bf16.mxu0 0
    %254 = vmatpush2.bf16.msra.mxu0 0
    %255 = vmatprep.subr.bf16.mxu0 0
    %256 = vmatpush2.bf16.msra.mxu0 0
    %257 = vmatprep.mubr.bf16.mxu0 0
    %258 = vmatmul.mubr.bf16.gmra.mxu0 %v153
    %v259 = vpop.f32.mrf.mxu0
    %v260 = vadd.f32 %v175, %v259
    %v261 = vpop.f32.mrf.mxu0
    %v262 = vpop.f32.mrf.mxu0
    %v263 = vpop.f32.mrf.mxu0
    %264 = vdwg.mxu0
    %v265 = vmax.f32 %v260, 0.0
    %v266 = vpack.c.bf16 %v265, %v265
    %v267 = vld [vmem:[%s5] sm:$0xf]
    %v268 = vld [vmem:[%s5 + $0x4] sm:$0xf]
    %v269 = vld [vmem:[%s5 + $0x8] sm:$0xf]
    %v270 = vld [vmem:[%s5 + $0xc] sm:$0xf]
    %v271 = vld [vmem:[%s5 + $0x10] sm:$0xf]
    %v272 = vld [vmem:[%s5 + $0x14] sm:$0xf]
    %v273 = vld [vmem:[%s5 + $0x18] sm:$0xf]
    %v274 = vld [vmem:[%s5 + $0x1c] sm:$0xf]
    %v275 = vld [vmem:[%s5 + $0x20] sm:$0xf]
    %v276 = vld [vmem:[%s5 + $0x24] sm:$0xf]
    %v277 = vld [vmem:[%s5 + $0x28] sm:$0xf]
    %v278 = vld [vmem:[%s5 + $0x2c] sm:$0xf]
    %v279 = vld [vmem:[%s5 + $0x30] sm:$0xf]
    %v280 = vld [vmem:[%s5 + $0x34] sm:$0xf]
    %v281 = vld [vmem:[%s5 + $0x38] sm:$0xf]
    %v282 = vld [vmem:[%s5 + $0x3c] sm:$0xf]
    %v283 = vld [vmem:[%s6] sm:$0x1]
    %v285 = vlaneseq
    %v286 = vshrl.u32 %v285, 7
    %v287 = vsub.s32 0, %v286
    %v288 = vrot.slane %v283, %v287
    %v306 = vunpack.c.l.b16 %v267
    %v307 = vunpack.c.l.b16 %v268
    %v308 = vunpack.c.l.b16 %v269
    %v309 = vunpack.c.l.b16 %v270
    %v310 = vunpack.c.l.b16 %v271
    %v311 = vunpack.c.l.b16 %v272
    %v312 = vunpack.c.l.b16 %v273
    %v313 = vunpack.c.l.b16 %v274
    %v314 = vunpack.c.l.b16 %v275
    %v315 = vunpack.c.l.b16 %v276
    %v316 = vunpack.c.l.b16 %v277
    %v317 = vunpack.c.l.b16 %v278
    %v318 = vunpack.c.l.b16 %v279
    %v319 = vunpack.c.l.b16 %v280
    %v320 = vunpack.c.l.b16 %v281
    %v321 = vunpack.c.l.b16 %v282
    %v322 = vpack.c.b16 %v307, %v306
    %v323 = vpack.c.b16 %v309, %v308
    %v324 = vpack.c.b16 %v311, %v310
    %v325 = vpack.c.b16 %v313, %v312
    %v326 = vpack.c.b16 %v315, %v314
    %v327 = vpack.c.b16 %v317, %v316
    %v328 = vpack.c.b16 %v319, %v318
    %v329 = vpack.c.b16 %v321, %v320
    %338 = vmatprep.subr.bf16.mxu0 0
    %339 = vmatpush1.bf16.msra.mxu0 %v329
    %340 = vmatprep.subr.bf16.mxu0 0
    %341 = vmatpush1.bf16.msra.mxu0 %v328
    %342 = vmatprep.subr.bf16.mxu0 0
    %343 = vmatpush1.bf16.msra.mxu0 %v327
    %344 = vmatprep.subr.bf16.mxu0 0
    %345 = vmatpush1.bf16.msra.mxu0 %v326
    %346 = vmatprep.subr.bf16.mxu0 0
    %347 = vmatpush1.bf16.msra.mxu0 %v325
    %348 = vmatprep.subr.bf16.mxu0 0
    %349 = vmatpush1.bf16.msra.mxu0 %v324
    %350 = vmatprep.subr.bf16.mxu0 0
    %351 = vmatpush1.bf16.msra.mxu0 %v323
    %352 = vmatprep.subr.bf16.mxu0 0
    %353 = vmatpush1.bf16.msra.mxu0 %v322
    %354 = vmatprep.subr.bf16.mxu0 0
    %355 = vmatpush2.bf16.msra.mxu0 0
    %356 = vmatprep.subr.bf16.mxu0 0
    %357 = vmatpush2.bf16.msra.mxu0 0
    %358 = vmatprep.subr.bf16.mxu0 0
    %359 = vmatpush2.bf16.msra.mxu0 0
    %360 = vmatprep.subr.bf16.mxu0 0
    %361 = vmatpush2.bf16.msra.mxu0 0
    %362 = vmatprep.subr.bf16.mxu0 0
    %363 = vmatpush2.bf16.msra.mxu0 0
    %364 = vmatprep.subr.bf16.mxu0 0
    %365 = vmatpush2.bf16.msra.mxu0 0
    %366 = vmatprep.subr.bf16.mxu0 0
    %367 = vmatpush2.bf16.msra.mxu0 0
    %368 = vmatprep.subr.bf16.mxu0 0
    %369 = vmatpush2.bf16.msra.mxu0 0
    %370 = vmatprep.mubr.bf16.mxu0 0
    %371 = vmatmul.mubr.bf16.gmra.mxu0 %v266
    %v372 = vpop.f32.mrf.mxu0
    %v373 = vadd.f32 %v288, %v372
    %v374 = vpop.f32.mrf.mxu0
    %v375 = vpop.f32.mrf.mxu0
    %v376 = vpop.f32.mrf.mxu0
    %377 = vdwg.mxu0
    %v378 = vmax.f32 %v373, 0.0
    %v379 = vpack.c.bf16 %v378, %v378
    %v380 = vld [vmem:[%s7] sm:$0xf]
    %v381 = vld [vmem:[%s7 + $0x4] sm:$0xf]
    %v382 = vld [vmem:[%s7 + $0x8] sm:$0xf]
    %v383 = vld [vmem:[%s7 + $0xc] sm:$0xf]
    %v384 = vld [vmem:[%s7 + $0x10] sm:$0xf]
    %v385 = vld [vmem:[%s7 + $0x14] sm:$0xf]
    %v386 = vld [vmem:[%s7 + $0x18] sm:$0xf]
    %v387 = vld [vmem:[%s7 + $0x1c] sm:$0xf]
    %v388 = vld [vmem:[%s7 + $0x20] sm:$0xf]
    %v389 = vld [vmem:[%s7 + $0x24] sm:$0xf]
    %v390 = vld [vmem:[%s7 + $0x28] sm:$0xf]
    %v391 = vld [vmem:[%s7 + $0x2c] sm:$0xf]
    %v392 = vld [vmem:[%s7 + $0x30] sm:$0xf]
    %v393 = vld [vmem:[%s7 + $0x34] sm:$0xf]
    %v394 = vld [vmem:[%s7 + $0x38] sm:$0xf]
    %v395 = vld [vmem:[%s7 + $0x3c] sm:$0xf]
    %v396 = vld [vmem:[%s8] sm:$0x1]
    %v398 = vlaneseq
    %v399 = vshrl.u32 %v398, 7
    %v400 = vsub.s32 0, %v399
    %v401 = vrot.slane %v396, %v400
    %v419 = vunpack.c.l.b16 %v380
    %v420 = vunpack.c.l.b16 %v381
    %v421 = vunpack.c.l.b16 %v382
    %v422 = vunpack.c.l.b16 %v383
    %v423 = vunpack.c.l.b16 %v384
    %v424 = vunpack.c.l.b16 %v385
    %v425 = vunpack.c.l.b16 %v386
    %v426 = vunpack.c.l.b16 %v387
    %v427 = vunpack.c.l.b16 %v388
    %v428 = vunpack.c.l.b16 %v389
    %v429 = vunpack.c.l.b16 %v390
    %v430 = vunpack.c.l.b16 %v391
    %v431 = vunpack.c.l.b16 %v392
    %v432 = vunpack.c.l.b16 %v393
    %v433 = vunpack.c.l.b16 %v394
    %v434 = vunpack.c.l.b16 %v395
    %v435 = vpack.c.b16 %v420, %v419
    %v436 = vpack.c.b16 %v422, %v421
    %v437 = vpack.c.b16 %v424, %v423
    %v438 = vpack.c.b16 %v426, %v425
    %v439 = vpack.c.b16 %v428, %v427
    %v440 = vpack.c.b16 %v430, %v429
    %v441 = vpack.c.b16 %v432, %v431
    %v442 = vpack.c.b16 %v434, %v433
    %451 = vmatprep.subr.bf16.mxu0 0
    %452 = vmatpush1.bf16.msra.mxu0 %v442
    %453 = vmatprep.subr.bf16.mxu0 0
    %454 = vmatpush1.bf16.msra.mxu0 %v441
    %455 = vmatprep.subr.bf16.mxu0 0
    %456 = vmatpush1.bf16.msra.mxu0 %v440
    %457 = vmatprep.subr.bf16.mxu0 0
    %458 = vmatpush1.bf16.msra.mxu0 %v439
    %459 = vmatprep.subr.bf16.mxu0 0
    %460 = vmatpush1.bf16.msra.mxu0 %v438
    %461 = vmatprep.subr.bf16.mxu0 0
    %462 = vmatpush1.bf16.msra.mxu0 %v437
    %463 = vmatprep.subr.bf16.mxu0 0
    %464 = vmatpush1.bf16.msra.mxu0 %v436
    %465 = vmatprep.subr.bf16.mxu0 0
    %466 = vmatpush1.bf16.msra.mxu0 %v435
    %467 = vmatprep.subr.bf16.mxu0 0
    %468 = vmatpush2.bf16.msra.mxu0 0
    %469 = vmatprep.subr.bf16.mxu0 0
    %470 = vmatpush2.bf16.msra.mxu0 0
    %471 = vmatprep.subr.bf16.mxu0 0
    %472 = vmatpush2.bf16.msra.mxu0 0
    %473 = vmatprep.subr.bf16.mxu0 0
    %474 = vmatpush2.bf16.msra.mxu0 0
    %475 = vmatprep.subr.bf16.mxu0 0
    %476 = vmatpush2.bf16.msra.mxu0 0
    %477 = vmatprep.subr.bf16.mxu0 0
    %478 = vmatpush2.bf16.msra.mxu0 0
    %479 = vmatprep.subr.bf16.mxu0 0
    %480 = vmatpush2.bf16.msra.mxu0 0
    %481 = vmatprep.subr.bf16.mxu0 0
    %482 = vmatpush2.bf16.msra.mxu0 0
    %483 = vmatprep.mubr.bf16.mxu0 0
    %484 = vmatmul.mubr.bf16.gmra.mxu0 %v379
    %v485 = vpop.f32.mrf.mxu0
    %v486 = vadd.f32 %v401, %v485
    %v487 = vpop.f32.mrf.mxu0
    %v488 = vpop.f32.mrf.mxu0
    %v489 = vpop.f32.mrf.mxu0
    %490 = vdwg.mxu0
    %v491 = vmax.f32 %v486, 0.0
    %v492 = vpack.c.bf16 %v491, %v491
    %v493 = vld [vmem:[%s9] sm:$0xf]
    %v494 = vld [vmem:[%s9 + $0x4] sm:$0xf]
    %v495 = vld [vmem:[%s9 + $0x8] sm:$0xf]
    %v496 = vld [vmem:[%s9 + $0xc] sm:$0xf]
    %v497 = vld [vmem:[%s9 + $0x10] sm:$0xf]
    %v498 = vld [vmem:[%s9 + $0x14] sm:$0xf]
    %v499 = vld [vmem:[%s9 + $0x18] sm:$0xf]
    %v500 = vld [vmem:[%s9 + $0x1c] sm:$0xf]
    %v501 = vld [vmem:[%s9 + $0x20] sm:$0xf]
    %v502 = vld [vmem:[%s9 + $0x24] sm:$0xf]
    %v503 = vld [vmem:[%s9 + $0x28] sm:$0xf]
    %v504 = vld [vmem:[%s9 + $0x2c] sm:$0xf]
    %v505 = vld [vmem:[%s9 + $0x30] sm:$0xf]
    %v506 = vld [vmem:[%s9 + $0x34] sm:$0xf]
    %v507 = vld [vmem:[%s9 + $0x38] sm:$0xf]
    %v508 = vld [vmem:[%s9 + $0x3c] sm:$0xf]
    %v509 = vld [vmem:[%s10] sm:$0x1]
    %v511 = vlaneseq
    %v512 = vshrl.u32 %v511, 7
    %v513 = vsub.s32 0, %v512
    %v514 = vrot.slane %v509, %v513
    %v532 = vunpack.c.l.b16 %v493
    %v533 = vunpack.c.l.b16 %v494
    %v534 = vunpack.c.l.b16 %v495
    %v535 = vunpack.c.l.b16 %v496
    %v536 = vunpack.c.l.b16 %v497
    %v537 = vunpack.c.l.b16 %v498
    %v538 = vunpack.c.l.b16 %v499
    %v539 = vunpack.c.l.b16 %v500
    %v540 = vunpack.c.l.b16 %v501
    %v541 = vunpack.c.l.b16 %v502
    %v542 = vunpack.c.l.b16 %v503
    %v543 = vunpack.c.l.b16 %v504
    %v544 = vunpack.c.l.b16 %v505
    %v545 = vunpack.c.l.b16 %v506
    %v546 = vunpack.c.l.b16 %v507
    %v547 = vunpack.c.l.b16 %v508
    %v548 = vpack.c.b16 %v533, %v532
    %v549 = vpack.c.b16 %v535, %v534
    %v550 = vpack.c.b16 %v537, %v536
    %v551 = vpack.c.b16 %v539, %v538
    %v552 = vpack.c.b16 %v541, %v540
    %v553 = vpack.c.b16 %v543, %v542
    %v554 = vpack.c.b16 %v545, %v544
    %v555 = vpack.c.b16 %v547, %v546
    %564 = vmatprep.subr.bf16.mxu0 0
    %565 = vmatpush1.bf16.msra.mxu0 %v555
    %566 = vmatprep.subr.bf16.mxu0 0
    %567 = vmatpush1.bf16.msra.mxu0 %v554
    %568 = vmatprep.subr.bf16.mxu0 0
    %569 = vmatpush1.bf16.msra.mxu0 %v553
    %570 = vmatprep.subr.bf16.mxu0 0
    %571 = vmatpush1.bf16.msra.mxu0 %v552
    %572 = vmatprep.subr.bf16.mxu0 0
    %573 = vmatpush1.bf16.msra.mxu0 %v551
    %574 = vmatprep.subr.bf16.mxu0 0
    %575 = vmatpush1.bf16.msra.mxu0 %v550
    %576 = vmatprep.subr.bf16.mxu0 0
    %577 = vmatpush1.bf16.msra.mxu0 %v549
    %578 = vmatprep.subr.bf16.mxu0 0
    %579 = vmatpush1.bf16.msra.mxu0 %v548
    %580 = vmatprep.subr.bf16.mxu0 0
    %581 = vmatpush2.bf16.msra.mxu0 0
    %582 = vmatprep.subr.bf16.mxu0 0
    %583 = vmatpush2.bf16.msra.mxu0 0
    %584 = vmatprep.subr.bf16.mxu0 0
    %585 = vmatpush2.bf16.msra.mxu0 0
    %586 = vmatprep.subr.bf16.mxu0 0
    %587 = vmatpush2.bf16.msra.mxu0 0
    %588 = vmatprep.subr.bf16.mxu0 0
    %589 = vmatpush2.bf16.msra.mxu0 0
    %590 = vmatprep.subr.bf16.mxu0 0
    %591 = vmatpush2.bf16.msra.mxu0 0
    %592 = vmatprep.subr.bf16.mxu0 0
    %593 = vmatpush2.bf16.msra.mxu0 0
    %594 = vmatprep.subr.bf16.mxu0 0
    %595 = vmatpush2.bf16.msra.mxu0 0
    %596 = vmatprep.mubr.bf16.mxu0 0
    %597 = vmatmul.mubr.bf16.gmra.mxu0 %v492
    %v598 = vpop.f32.mrf.mxu0
    %v599 = vadd.f32 %v514, %v598
    %v600 = vpop.f32.mrf.mxu0
    %v601 = vpop.f32.mrf.mxu0
    %v602 = vpop.f32.mrf.mxu0
    %603 = vdwg.mxu0
    %604 = vst [vmem:[#allocation2] sm:$0xff] %v599
    // Predicated region
    $region46: #{neural_net4_forward.1} parent=1 // pred_check
      _
    $region47: #{neural_net4_forward.1} parent=1 // pred_check_branch
      %606 = sbr.rel (0) target = $region49
    $region48: #{neural_net4_forward.1} parent=1 // pred_region
      %s608 = ssub.s32 128, 128
      %609 = vsyncadd [#allocation3], %s608
      %s611 = sshll.u32 [#allocation2], 4
      %s612 = int_to_ptr.vmem [resolvable:$true] %s611
      %614 = dma.vmem_to_hbm [thread:$0]  %s612, 128, %s11, [#allocation3]
    $region49: #{neural_net4_forward.1} parent=1 // pred_fallthru
      _
    // Predicated region
    $region50: #{neural_net4_forward.1} parent=1 // pred_check
      _
    $region51: #{neural_net4_forward.1} parent=1 // pred_check_branch
      %616 = sbr.rel (0) target = $region53
    $region52: #{neural_net4_forward.1} parent=1 // pred_region
      %617 = dma.done [#allocation3], 128
    $region53: #{neural_net4_forward.1} parent=1 // pred_fallthru
      _
    %618 = vsyncpa [#allocation3], 1

</llo_original>
